<compile_context>
chip_gen: v7x
topology: tpu7x:2x2x1
jax: 0.10.0
libtpu: 0.0.40
codegen_flags: <defaults>
</compile_context>

<pallas_src>
import functools

import jax
import jax.numpy as jnp
from jax import lax
from jax.experimental import pallas as pl
from jax.experimental.pallas import tpu as pltpu

NUM_POOLINGS = 5        # 'all' pooling -> [first, last, min, max, avg]
NUM_CHANNELS = 4        # effective channels after folding first == last
KERNEL_SIZE = 5         # Conv1d kernel_size == num_poolings
PAD = KERNEL_SIZE // 2  # padding='same', stride=1


def _round_up(x, m):
    return ((x + m - 1) // m) * m


def _round_down(x, m):
    return (x // m) * m


def _vmem_limit_bytes():
    """Generation-aware scoped-VMEM budget (v5e/v6e: 128 MiB phys, v7x: 64 MiB)."""
    cap = 64 * 1024 * 1024
    try:
        info = pltpu.get_tpu_info()
        cap = int(getattr(info, "vmem_capacity_bytes", cap)) or cap
    except Exception:
        pass
    # ~70% of physical per-core VMEM, hard-capped at 100 MiB on the 128 MiB parts.
    return min(int(cap * 0.7), 100 * 1024 * 1024)


def _pick_tiles(B, S, D, itemsize, vmem_limit_bytes):
    """Choose (tb, ts) = (batch rows, seq rows) per grid step from the VMEM budget.

    Budget model: 2x double-buffered input blocks (tb*ts*D*itemsize each) + 2x output
    blocks + 4 f32 running-stat scratch rows, targeting ~70% of the scoped VMEM limit.
    Prefer a large batch tile (per-step overhead ~0.35 us; 512-row tiles ~85% of HBM
    roofline on v6e) and stream S with running reductions when S*D is too big, so the
    batch tile never shrinks for long sequences (important on v7x's 64 MiB VMEM).
    """
    budget = int(0.70 * vmem_limit_bytes)
    fixed_row_bytes = (2 + 4) * D * 4          # 2x out buffers + 4 f32 scratch rows

    def fits(tb_, ts_):
        return tb_ * (2 * ts_ * D * itemsize + fixed_row_bytes) <= budget

    if B <= 8:
        tb = B                                  # block == full batch dim (exact fit)
    else:
        # Large batch tile, but keep >= 2 steps on the parallel axis (both v7x TCs get
        # work) and never more than one ragged tail block over B.
        tb = min(_round_up(pl.cdiv(B, 2), 8), _round_up(B, 8), 1024)

    ts = S
    while not fits(tb, ts):
        if ts > 8:
            ts = max(8, _round_down(ts // 2, 8))   # stream S before shrinking tb
        elif tb > 8:
            tb = max(8, _round_down(tb // 2, 8))
        else:
            break
    return tb, ts


def _shift_lanes(tap, shift):
    """out[:, d] = tap[:, d - shift], zero-filled at the edges (no wraparound)."""
    tb, d = tap.shape
    z = jnp.zeros((tb, abs(shift)), jnp.float32)
    if shift > 0:
        return jnp.concatenate([z, tap[:, : d - shift]], axis=1)
    return jnp.concatenate([tap[:, -shift:], z], axis=1)


def conv_pooling_kernel(x_ref, w_ref, o_ref, first_sc, mn_sc, mx_sc, sum_sc,
                        *, s_total, ts, inv_s):
    # x_ref: (TB, TS, D) VMEM, native dtype ; w_ref: (20,) SMEM f32 (4 folded channels
    # x 5 taps) ; o_ref: (TB, D) ; scratch: 4 x (TB, D) f32 running statistics.
    s = pl.program_id(1)
    n_s = pl.num_programs(1)

    x = x_ref[...]                                          # (TB, TS, D) native dtype

    if s_total % ts != 0:
        # Ragged S tail: mask OOB sequence rows so they cannot poison valid batch rows.
        srow = lax.broadcasted_iota(jnp.int32, x.shape, 1)
        valid = (s * ts + srow) < s_total
        blk_mn = jnp.min(jnp.where(valid, x, jnp.inf), axis=1)
        blk_mx = jnp.max(jnp.where(valid, x, -jnp.inf), axis=1)
        blk_sm = jnp.sum(jnp.where(valid, x, 0.0), axis=1, dtype=jnp.float32)
    else:
        blk_mn = jnp.min(x, axis=1)
        blk_mx = jnp.max(x, axis=1)
        blk_sm = jnp.sum(x, axis=1, dtype=jnp.float32)

    blk_mn = blk_mn.astype(jnp.float32)
    blk_mx = blk_mx.astype(jnp.float32)

    @pl.when(s == 0)
    def _():
        first_sc[...] = x[:, 0, :].astype(jnp.float32)      # row 0 == "first" == "last"
        mn_sc[...] = blk_mn
        mx_sc[...] = blk_mx
        sum_sc[...] = blk_sm

    @pl.when(s != 0)
    def _():
        mn_sc[...] = jnp.minimum(mn_sc[...], blk_mn)
        mx_sc[...] = jnp.maximum(mx_sc[...], blk_mx)
        sum_sc[...] = sum_sc[...] + blk_sm

    @pl.when(s == n_s - 1)
    def _():
        first = first_sc[...]
        mn = mn_sc[...]
        mx = mx_sc[...]
        avg = sum_sc[...] * inv_s        # mean via static reciprocal (~1 ulp vs /S)

        # Conv1d(in=5, out=1, k=5, padding='same', bias=False) along D, folded to 4
        # effective channels.  5 full-tile tap FMAs; the k == PAD (zero-shift) tap
        # seeds the accumulator, the 4 shifted taps are added on top.
        def tap(k):
            return (w_ref[0 * KERNEL_SIZE + k] * first
                    + w_ref[1 * KERNEL_SIZE + k] * mn
                    + w_ref[2 * KERNEL_SIZE + k] * mx
                    + w_ref[3 * KERNEL_SIZE + k] * avg)

        acc = tap(PAD)
        for k in range(KERNEL_SIZE):
            if k == PAD:
                continue
            acc = acc + _shift_lanes(tap(k), PAD - k)

        o_ref[...] = acc.astype(o_ref.dtype)


def conv_pooling(x, w, *, tb=None, ts=None, vmem_limit_bytes=None):
    """Forward of ConvPooling(emb_dim=D, 'all', use_batch_norm=False, dim=1).

    x: (B, S, D) ; w: (5, KERNEL_SIZE) Conv1d weight with the out-channel dim squeezed.
    Returns (B, D).
    """
    B, S, D = x.shape
    assert D >= KERNEL_SIZE, "emb_dim must be >= conv kernel size"
    assert w.shape == (NUM_POOLINGS, KERNEL_SIZE)

    # Fold the duplicated first/last channel (reference 'last' reads row 0 too, since it
    # calls last_pooling(x, lengths=dim=1)) and flatten to 1-D (avoids 2-D SMEM padding).
    w_eff = jnp.concatenate(
        [(w[0] + w[1]).ravel(), w[2].ravel(), w[3].ravel(), w[4].ravel()]
    ).astype(jnp.float32)                                   # (NUM_CHANNELS * KERNEL_SIZE,)

    if vmem_limit_bytes is None:
        vmem_limit_bytes = _vmem_limit_bytes()
    itemsize = jnp.dtype(x.dtype).itemsize
    tb_auto, ts_auto = _pick_tiles(B, S, D, itemsize, vmem_limit_bytes)
    tb = tb_auto if tb is None else tb
    ts = min(S, ts_auto if ts is None else ts)

    grid = (pl.cdiv(B, tb), pl.cdiv(S, ts))                 # reduction (S) axis innermost
    kernel = functools.partial(conv_pooling_kernel, s_total=S, ts=ts, inv_s=1.0 / S)

    return pl.pallas_call(
        kernel,
        out_shape=jax.ShapeDtypeStruct((B, D), x.dtype),
        grid=grid,
        in_specs=[
            pl.BlockSpec((tb, ts, D), lambda b, s: (b, s, 0)),
            pl.BlockSpec(memory_space=pltpu.MemorySpace.SMEM),
        ],
        out_specs=pl.BlockSpec((tb, D), lambda b, s: (b, 0)),
        scratch_shapes=[pltpu.VMEM((tb, D), jnp.float32) for _ in range(4)],
        compiler_params=pltpu.CompilerParams(
            dimension_semantics=("parallel", "arbitrary"),
            vmem_limit_bytes=int(vmem_limit_bytes),
        ),
    )(x, w_eff)


def conv_pooling_ref(x, w):
    """Pure-JAX reference mirroring the PyTorch forward (un-folded 5 channels)."""
    first = x[:, 0, :]
    last = x[:, 0, :]   # lengths == dim == 1 -> row 0 (reference behavior reproduced)
    mn = jnp.min(x, axis=1)
    mx = jnp.max(x, axis=1)
    avg = jnp.mean(x, axis=1)
    pooled = jnp.stack([first, last, mn, mx, avg], axis=1)          # (B, 5, D)
    padded = jnp.pad(pooled, ((0, 0), (0, 0), (PAD, PAD)))
    D = x.shape[2]
    out = jnp.zeros((x.shape[0], D), x.dtype)
    for c in range(NUM_POOLINGS):
        for k in range(KERNEL_SIZE):
            out = out + w[c, k] * padded[:, c, k:k + D]
    return out


if __name__ == "__main__":
    key = jax.random.PRNGKey(0)
    kx1, kx2, kw = jax.random.split(key, 3)

    # Conv1d weight (out=1, in=5, k=5), bias=False; uniform(-1/sqrt(25), 1/sqrt(25)).
    bound = 1.0 / (NUM_POOLINGS * KERNEL_SIZE) ** 0.5
    w = jax.random.uniform(kw, (NUM_POOLINGS, KERNEL_SIZE),
                           minval=-bound, maxval=bound, dtype=jnp.float32)

    # Case 1: module-spec small shapes (single exact block: tb == B, ts == S).
    B, S, D = 2, 8, 32
    x = jax.random.normal(kx1, (B, S, D), dtype=jnp.float32)
    out = jax.block_until_ready(conv_pooling(x, w))
    ref = conv_pooling_ref(x, w)
    assert out.shape == (B, D)
    assert jnp.allclose(out, ref, atol=2e-5, rtol=2e-5), "mismatch vs reference (case 1)"

    # Case 2: ragged batch tail (no wrapper pad) + streamed S axis with ragged S tail,
    # exercising the running-reduction scratch and the multi-step parallel batch grid.
    B2, S2, D2 = 12, 20, 128
    x2 = jax.random.normal(kx2, (B2, S2, D2), dtype=jnp.float32)
    out2 = jax.block_until_ready(conv_pooling(x2, w, ts=8))
    ref2 = conv_pooling_ref(x2, w)
    assert out2.shape == (B2, D2)
    assert jnp.allclose(out2, ref2, atol=2e-5, rtol=2e-5), "mismatch vs reference (case 2)"

    print("KERNEL_OK")
</pallas_src>

<mosaic_0001>
module attributes {stable_mosaic.version = 11 : i64} {
  func.func @conv_pooling_kernel(%arg0: i32, %arg1: i32, %arg2: memref<2x8x32xf32, #tpu.memory_space<vmem>>, %arg3: memref<20xf32, #tpu.memory_space<smem>>, %arg4: memref<2x32xf32, #tpu.memory_space<vmem>>, %arg5: memref<2x32xf32, #tpu.memory_space<vmem>>, %arg6: memref<2x32xf32, #tpu.memory_space<vmem>>, %arg7: memref<2x32xf32, #tpu.memory_space<vmem>>, %arg8: memref<2x32xf32, #tpu.memory_space<vmem>>) attributes {dimension_semantics = [#tpu.dimension_semantics<parallel>, #tpu.dimension_semantics<arbitrary>], iteration_bounds = array<i64: 1, 1>, scalar_prefetch = 0 : i64, scratch_operands = 4 : i64, tpu.core_type = #tpu.core_type<tc>, window_params = [{transform_indices = @transform_0, window_bounds = array<i64: 2, 8, 32>}, {transform_indices = @transform_1, window_bounds = array<i64: 20>}, {transform_indices = @transform_2, window_bounds = array<i64: 2, 32>}]} {
    %c0 = arith.constant 0 : index
    %c0_0 = arith.constant 0 : index
    %c0_1 = arith.constant 0 : index
    %0 = vector.load %arg2[%c0, %c0_0, %c0_1] : memref<2x8x32xf32, #tpu.memory_space<vmem>>, vector<2x8x32xf32>
    %cst = arith.constant dense<0x7F800000> : vector<2x32xf32>
    %1 = vector.multi_reduction <minimumf>, %0, %cst [1] : vector<2x8x32xf32> to vector<2x32xf32>
    %cst_2 = arith.constant dense<0xFF800000> : vector<2x32xf32>
    %2 = vector.multi_reduction <maximumf>, %0, %cst_2 [1] : vector<2x8x32xf32> to vector<2x32xf32>
    %cst_3 = arith.constant dense<0.000000e+00> : vector<2x32xf32>
    %3 = vector.multi_reduction <add>, %0, %cst_3 [1] : vector<2x8x32xf32> to vector<2x32xf32>
    %c0_i32 = arith.constant 0 : i32
    %4 = arith.cmpi eq, %arg1, %c0_i32 : i32
    %5 = arith.extui %4 : i1 to i32
    %c0_i32_4 = arith.constant 0 : i32
    %6 = arith.cmpi ne, %5, %c0_i32_4 : i32
    scf.if %6 {
      %13 = vector.extract_strided_slice %0 {offsets = [0, 0, 0], sizes = [2, 1, 32], strides = [1, 1, 1]} : vector<2x8x32xf32> to vector<2x1x32xf32>
      %14 = vector.shape_cast %13 : vector<2x1x32xf32> to vector<2x32xf32>
      %c0_9 = arith.constant 0 : index
      %c0_10 = arith.constant 0 : index
      %15 = vector.load %arg5[%c0_9, %c0_10] : memref<2x32xf32, #tpu.memory_space<vmem>>, vector<2x32xf32>
      tpu.vector_store %arg5[%c0_9, %c0_10], %14 {strides = array<i32>} : memref<2x32xf32, #tpu.memory_space<vmem>>, vector<2x32xf32>,
      %c0_11 = arith.constant 0 : index
      %c0_12 = arith.constant 0 : index
      %16 = vector.load %arg6[%c0_11, %c0_12] : memref<2x32xf32, #tpu.memory_space<vmem>>, vector<2x32xf32>
      tpu.vector_store %arg6[%c0_11, %c0_12], %1 {strides = array<i32>} : memref<2x32xf32, #tpu.memory_space<vmem>>, vector<2x32xf32>,
      %c0_13 = arith.constant 0 : index
      %c0_14 = arith.constant 0 : index
      %17 = vector.load %arg7[%c0_13, %c0_14] : memref<2x32xf32, #tpu.memory_space<vmem>>, vector<2x32xf32>
      tpu.vector_store %arg7[%c0_13, %c0_14], %2 {strides = array<i32>} : memref<2x32xf32, #tpu.memory_space<vmem>>, vector<2x32xf32>,
      %c0_15 = arith.constant 0 : index
      %c0_16 = arith.constant 0 : index
      %18 = vector.load %arg8[%c0_15, %c0_16] : memref<2x32xf32, #tpu.memory_space<vmem>>, vector<2x32xf32>
      tpu.vector_store %arg8[%c0_15, %c0_16], %3 {strides = array<i32>} : memref<2x32xf32, #tpu.memory_space<vmem>>, vector<2x32xf32>,
    } else {
    }
    %c0_i32_5 = arith.constant 0 : i32
    %7 = arith.cmpi ne, %arg1, %c0_i32_5 : i32
    %8 = arith.extui %7 : i1 to i32
    %c0_i32_6 = arith.constant 0 : i32
    %9 = arith.cmpi ne, %8, %c0_i32_6 : i32
    scf.if %9 {
      %c0_9 = arith.constant 0 : index
      %c0_10 = arith.constant 0 : index
      %13 = vector.load %arg6[%c0_9, %c0_10] : memref<2x32xf32, #tpu.memory_space<vmem>>, vector<2x32xf32>
      %14 = arith.minimumf %13, %1 : vector<2x32xf32>
      %c0_11 = arith.constant 0 : index
      %c0_12 = arith.constant 0 : index
      %15 = vector.load %arg6[%c0_11, %c0_12] : memref<2x32xf32, #tpu.memory_space<vmem>>, vector<2x32xf32>
      tpu.vector_store %arg6[%c0_11, %c0_12], %14 {strides = array<i32>} : memref<2x32xf32, #tpu.memory_space<vmem>>, vector<2x32xf32>,
      %c0_13 = arith.constant 0 : index
      %c0_14 = arith.constant 0 : index
      %16 = vector.load %arg7[%c0_13, %c0_14] : memref<2x32xf32, #tpu.memory_space<vmem>>, vector<2x32xf32>
      %17 = arith.maximumf %16, %2 : vector<2x32xf32>
      %c0_15 = arith.constant 0 : index
      %c0_16 = arith.constant 0 : index
      %18 = vector.load %arg7[%c0_15, %c0_16] : memref<2x32xf32, #tpu.memory_space<vmem>>, vector<2x32xf32>
      tpu.vector_store %arg7[%c0_15, %c0_16], %17 {strides = array<i32>} : memref<2x32xf32, #tpu.memory_space<vmem>>, vector<2x32xf32>,
      %c0_17 = arith.constant 0 : index
      %c0_18 = arith.constant 0 : index
      %19 = vector.load %arg8[%c0_17, %c0_18] : memref<2x32xf32, #tpu.memory_space<vmem>>, vector<2x32xf32>
      %20 = arith.addf %19, %3 : vector<2x32xf32>
      %c0_19 = arith.constant 0 : index
      %c0_20 = arith.constant 0 : index
      %21 = vector.load %arg8[%c0_19, %c0_20] : memref<2x32xf32, #tpu.memory_space<vmem>>, vector<2x32xf32>
      tpu.vector_store %arg8[%c0_19, %c0_20], %20 {strides = array<i32>} : memref<2x32xf32, #tpu.memory_space<vmem>>, vector<2x32xf32>,
    } else {
    }
    %c0_i32_7 = arith.constant 0 : i32
    %10 = arith.cmpi eq, %arg1, %c0_i32_7 : i32
    %11 = arith.extui %10 : i1 to i32
    %c0_i32_8 = arith.constant 0 : i32
    %12 = arith.cmpi ne, %11, %c0_i32_8 : i32
    scf.if %12 {
      %c0_9 = arith.constant 0 : index
      %c0_10 = arith.constant 0 : index
      %13 = vector.load %arg5[%c0_9, %c0_10] : memref<2x32xf32, #tpu.memory_space<vmem>>, vector<2x32xf32>
      %c0_11 = arith.constant 0 : index
      %c0_12 = arith.constant 0 : index
      %14 = vector.load %arg6[%c0_11, %c0_12] : memref<2x32xf32, #tpu.memory_space<vmem>>, vector<2x32xf32>
      %c0_13 = arith.constant 0 : index
      %c0_14 = arith.constant 0 : index
      %15 = vector.load %arg7[%c0_13, %c0_14] : memref<2x32xf32, #tpu.memory_space<vmem>>, vector<2x32xf32>
      %c0_15 = arith.constant 0 : index
      %c0_16 = arith.constant 0 : index
      %16 = vector.load %arg8[%c0_15, %c0_16] : memref<2x32xf32, #tpu.memory_space<vmem>>, vector<2x32xf32>
      %cst_17 = arith.constant 1.250000e-01 : f32
      %17 = vector.broadcast %cst_17 : f32 to vector<2x32xf32>
      %18 = arith.mulf %16, %17 : vector<2x32xf32>
      %c2 = arith.constant 2 : index
      %19 = memref.load %arg3[%c2] : memref<20xf32, #tpu.memory_space<smem>>
      %20 = vector.broadcast %19 : f32 to vector<2x32xf32>
      %21 = arith.mulf %20, %13 : vector<2x32xf32>
      %c7 = arith.constant 7 : index
      %22 = memref.load %arg3[%c7] : memref<20xf32, #tpu.memory_space<smem>>
      %23 = vector.broadcast %22 : f32 to vector<2x32xf32>
      %24 = arith.mulf %23, %14 : vector<2x32xf32>
      %25 = arith.addf %21, %24 : vector<2x32xf32>
      %c12 = arith.constant 12 : index
      %26 = memref.load %arg3[%c12] : memref<20xf32, #tpu.memory_space<smem>>
      %27 = vector.broadcast %26 : f32 to vector<2x32xf32>
      %28 = arith.mulf %27, %15 : vector<2x32xf32>
      %29 = arith.addf %25, %28 : vector<2x32xf32>
      %c17 = arith.constant 17 : index
      %30 = memref.load %arg3[%c17] : memref<20xf32, #tpu.memory_space<smem>>
      %31 = vector.broadcast %30 : f32 to vector<2x32xf32>
      %32 = arith.mulf %31, %18 : vector<2x32xf32>
      %33 = arith.addf %29, %32 : vector<2x32xf32>
      %c0_18 = arith.constant 0 : index
      %34 = memref.load %arg3[%c0_18] : memref<20xf32, #tpu.memory_space<smem>>
      %35 = vector.broadcast %34 : f32 to vector<2x32xf32>
      %36 = arith.mulf %35, %13 : vector<2x32xf32>
      %c5 = arith.constant 5 : index
      %37 = memref.load %arg3[%c5] : memref<20xf32, #tpu.memory_space<smem>>
      %38 = vector.broadcast %37 : f32 to vector<2x32xf32>
      %39 = arith.mulf %38, %14 : vector<2x32xf32>
      %40 = arith.addf %36, %39 : vector<2x32xf32>
      %c10 = arith.constant 10 : index
      %41 = memref.load %arg3[%c10] : memref<20xf32, #tpu.memory_space<smem>>
      %42 = vector.broadcast %41 : f32 to vector<2x32xf32>
      %43 = arith.mulf %42, %15 : vector<2x32xf32>
      %44 = arith.addf %40, %43 : vector<2x32xf32>
      %c15 = arith.constant 15 : index
      %45 = memref.load %arg3[%c15] : memref<20xf32, #tpu.memory_space<smem>>
      %46 = vector.broadcast %45 : f32 to vector<2x32xf32>
      %47 = arith.mulf %46, %18 : vector<2x32xf32>
      %48 = arith.addf %44, %47 : vector<2x32xf32>
      %cst_19 = arith.constant 0.000000e+00 : f32
      %49 = vector.broadcast %cst_19 : f32 to vector<2x2xf32>
      %50 = vector.extract_strided_slice %48 {offsets = [0, 0], sizes = [2, 30], strides = [1, 1]} : vector<2x32xf32> to vector<2x30xf32>
      %51 = tpu.concatenate %49, %50 in 1 : vector<2x2xf32>, vector<2x30xf32> -> vector<2x32xf32>
      %52 = arith.addf %33, %51 : vector<2x32xf32>
      %c1 = arith.constant 1 : index
      %53 = memref.load %arg3[%c1] : memref<20xf32, #tpu.memory_space<smem>>
      %54 = vector.broadcast %53 : f32 to vector<2x32xf32>
      %55 = arith.mulf %54, %13 : vector<2x32xf32>
      %c6 = arith.constant 6 : index
      %56 = memref.load %arg3[%c6] : memref<20xf32, #tpu.memory_space<smem>>
      %57 = vector.broadcast %56 : f32 to vector<2x32xf32>
      %58 = arith.mulf %57, %14 : vector<2x32xf32>
      %59 = arith.addf %55, %58 : vector<2x32xf32>
      %c11 = arith.constant 11 : index
      %60 = memref.load %arg3[%c11] : memref<20xf32, #tpu.memory_space<smem>>
      %61 = vector.broadcast %60 : f32 to vector<2x32xf32>
      %62 = arith.mulf %61, %15 : vector<2x32xf32>
      %63 = arith.addf %59, %62 : vector<2x32xf32>
      %c16 = arith.constant 16 : index
      %64 = memref.load %arg3[%c16] : memref<20xf32, #tpu.memory_space<smem>>
      %65 = vector.broadcast %64 : f32 to vector<2x32xf32>
      %66 = arith.mulf %65, %18 : vector<2x32xf32>
      %67 = arith.addf %63, %66 : vector<2x32xf32>
      %cst_20 = arith.constant 0.000000e+00 : f32
      %68 = vector.broadcast %cst_20 : f32 to vector<2x1xf32>
      %69 = vector.extract_strided_slice %67 {offsets = [0, 0], sizes = [2, 31], strides = [1, 1]} : vector<2x32xf32> to vector<2x31xf32>
      %70 = tpu.concatenate %68, %69 in 1 : vector<2x1xf32>, vector<2x31xf32> -> vector<2x32xf32>
      %71 = arith.addf %52, %70 : vector<2x32xf32>
      %c3 = arith.constant 3 : index
      %72 = memref.load %arg3[%c3] : memref<20xf32, #tpu.memory_space<smem>>
      %73 = vector.broadcast %72 : f32 to vector<2x32xf32>
      %74 = arith.mulf %73, %13 : vector<2x32xf32>
      %c8 = arith.constant 8 : index
      %75 = memref.load %arg3[%c8] : memref<20xf32, #tpu.memory_space<smem>>
      %76 = vector.broadcast %75 : f32 to vector<2x32xf32>
      %77 = arith.mulf %76, %14 : vector<2x32xf32>
      %78 = arith.addf %74, %77 : vector<2x32xf32>
      %c13 = arith.constant 13 : index
      %79 = memref.load %arg3[%c13] : memref<20xf32, #tpu.memory_space<smem>>
      %80 = vector.broadcast %79 : f32 to vector<2x32xf32>
      %81 = arith.mulf %80, %15 : vector<2x32xf32>
      %82 = arith.addf %78, %81 : vector<2x32xf32>
      %c18 = arith.constant 18 : index
      %83 = memref.load %arg3[%c18] : memref<20xf32, #tpu.memory_space<smem>>
      %84 = vector.broadcast %83 : f32 to vector<2x32xf32>
      %85 = arith.mulf %84, %18 : vector<2x32xf32>
      %86 = arith.addf %82, %85 : vector<2x32xf32>
      %cst_21 = arith.constant 0.000000e+00 : f32
      %87 = vector.broadcast %cst_21 : f32 to vector<2x1xf32>
      %88 = vector.extract_strided_slice %86 {offsets = [0, 1], sizes = [2, 31], strides = [1, 1]} : vector<2x32xf32> to vector<2x31xf32>
      %89 = tpu.concatenate %88, %87 in 1 : vector<2x31xf32>, vector<2x1xf32> -> vector<2x32xf32>
      %90 = arith.addf %71, %89 : vector<2x32xf32>
      %c4 = arith.constant 4 : index
      %91 = memref.load %arg3[%c4] : memref<20xf32, #tpu.memory_space<smem>>
      %92 = vector.broadcast %91 : f32 to vector<2x32xf32>
      %93 = arith.mulf %92, %13 : vector<2x32xf32>
      %c9 = arith.constant 9 : index
      %94 = memref.load %arg3[%c9] : memref<20xf32, #tpu.memory_space<smem>>
      %95 = vector.broadcast %94 : f32 to vector<2x32xf32>
      %96 = arith.mulf %95, %14 : vector<2x32xf32>
      %97 = arith.addf %93, %96 : vector<2x32xf32>
      %c14 = arith.constant 14 : index
      %98 = memref.load %arg3[%c14] : memref<20xf32, #tpu.memory_space<smem>>
      %99 = vector.broadcast %98 : f32 to vector<2x32xf32>
      %100 = arith.mulf %99, %15 : vector<2x32xf32>
      %101 = arith.addf %97, %100 : vector<2x32xf32>
      %c19 = arith.constant 19 : index
      %102 = memref.load %arg3[%c19] : memref<20xf32, #tpu.memory_space<smem>>
      %103 = vector.broadcast %102 : f32 to vector<2x32xf32>
      %104 = arith.mulf %103, %18 : vector<2x32xf32>
      %105 = arith.addf %101, %104 : vector<2x32xf32>
      %cst_22 = arith.constant 0.000000e+00 : f32
      %106 = vector.broadcast %cst_22 : f32 to vector<2x2xf32>
      %107 = vector.extract_strided_slice %105 {offsets = [0, 2], sizes = [2, 30], strides = [1, 1]} : vector<2x32xf32> to vector<2x30xf32>
      %108 = tpu.concatenate %107, %106 in 1 : vector<2x30xf32>, vector<2x2xf32> -> vector<2x32xf32>
      %109 = arith.addf %90, %108 : vector<2x32xf32>
      %c0_23 = arith.constant 0 : index
      %c0_24 = arith.constant 0 : index
      %110 = vector.load %arg4[%c0_23, %c0_24] : memref<2x32xf32, #tpu.memory_space<vmem>>, vector<2x32xf32>
      tpu.vector_store %arg4[%c0_23, %c0_24], %109 {strides = array<i32>} : memref<2x32xf32, #tpu.memory_space<vmem>>, vector<2x32xf32>,
    } else {
    }
    return
  }
  func.func @transform_0(%arg0: i32, %arg1: i32) -> (i32, i32, i32) {
    %c0_i32 = arith.constant 0 : i32
    %c0_i32_0 = arith.constant 0 : i32
    return %arg0, %arg1, %c0_i32 : i32, i32, i32
  }
  func.func @transform_1(%arg0: i32, %arg1: i32) -> i32 {
    %c0_i32 = arith.constant 0 : i32
    %c0_i32_0 = arith.constant 0 : i32
    return %c0_i32 : i32
  }
  func.func @transform_2(%arg0: i32, %arg1: i32) -> (i32, i32) {
    %c0_i32 = arith.constant 0 : i32
    %c0_i32_0 = arith.constant 0 : i32
    return %arg0, %c0_i32 : i32, i32
  }
}

</mosaic_0001>

<llo_original>
// kernel: tpu_custom_call.1
$region0: #{tpu_custom_call.1}
  #allocation0 [shape = 'u32[]', space=smem, size = 0x4, offset = 0x4, fixed_abs, tag = 'smem constant byte address 0x4 - core index']
  #allocation1 [shape = 'u32[144,128]{1,0:T(1,128)}', space=vmem, size = 0x12000, scoped, tag = 'internal scratch']
  #allocation2 [shape = 'f32[2,32]{1,0:T(2,128)}', space=vmem, size = 0x400, scoped, tag = 'scratch operand']
  #allocation3 [shape = 'f32[2,32]{1,0:T(2,128)}', space=vmem, size = 0x400, scoped, tag = 'scratch operand']
  #allocation4 [shape = 'f32[2,32]{1,0:T(2,128)}', space=vmem, size = 0x400, scoped, tag = 'scratch operand']
  #allocation5 [shape = 'f32[2,32]{1,0:T(2,128)}', space=vmem, size = 0x400, scoped, tag = 'scratch operand']
  %s0 = inlined_call_operand.hbm [shape: f32[2,8,32], index: 0, kind: input, shape index: {}]
  %s1 = inlined_call_operand.vmem [shape: f32[20], index: 1, kind: input, shape index: {}]
  %s2 = inlined_call_operand.hbm [shape: f32[2,32], index: 2, kind: output, shape index: {}]
  %s3 = sld [smem:[#allocation0]]
  $region38: #{tpu_custom_call.1} parent=0
    _
  %s5 = ssub.s32 1, %s3
  %s6 = scalar_select 0, %s5, %s3
  $region1: #{tpu_custom_call.1} parent=0
    #allocation6 [shape = 'u8[8192]{0}', space=vmem, size = 0x2000, scoped, tag = 'input window, operand 0, single buffered']
    #allocation7 [shape = 's32[1]{0}', space=sflag, size = 0x4, scoped, tag = 'scoped memory for tpu_custom_call.1']
    #allocation8 [shape = 's32[1]{0}', space=sflag, size = 0x4, scoped, tag = 'scoped memory for tpu_custom_call.1']
    #allocation9 [shape = 's32[1]{0}', space=sflag, size = 0x4, scoped, tag = 'scoped memory for tpu_custom_call.1']
    #allocation10 [shape = 'u8[512]{0}', space=smem, size = 0x200, scoped, tag = 'input window, operand 1, single buffered']
    #allocation11 [shape = 'u8[1024]{0}', space=vmem, size = 0x400, scoped, tag = 'output window, operand 0, single buffered']
    %7 = vsyncpa [#allocation7], 0
    %8 = vsyncpa [#allocation9], 0
    %9 = vsyncpa [#allocation8], 0
    // Predicated region
    $region2: #{tpu_custom_call.1} parent=1 // pred_check
      _
    $region3: #{tpu_custom_call.1} parent=1 // pred_check_branch
      %11 = sbr.rel (0) target = $region5
    $region4: #{tpu_custom_call.1} parent=1 // pred_region
      %s13 = ssub.s32 256, 256
      %14 = vsyncadd [#allocation7], %s13
      %s15 = sshll.u32 [#allocation6], 4
      %s16 = int_to_ptr.vmem [resolvable:$true] %s15
      %21 = dma.hbm_to_vmem [thread:$0]  %s0, 256, %s16, [#allocation7], 128, 128, 8
    $region5: #{tpu_custom_call.1} parent=1 // pred_fallthru
      _
    // Predicated region
    $region6: #{tpu_custom_call.1} parent=1 // pred_check
      _
    $region7: #{tpu_custom_call.1} parent=1 // pred_check_branch
      %23 = sbr.rel (0) target = $region9
    $region8: #{tpu_custom_call.1} parent=1 // pred_region
      %s25 = ssub.s32 16, 16
      %26 = vsyncadd [#allocation9], %s25
      %s28 = sshll.u32 %s1, 4
      %s29 = int_to_ptr.vmem [resolvable:$true] %s28
      %31 = dma.vmem_to_smem %s29, 16, [#allocation10], [#allocation9]
    $region9: #{tpu_custom_call.1} parent=1 // pred_fallthru
      _
    // Predicated region
    $region10: #{tpu_custom_call.1} parent=1 // pred_check
      _
    $region11: #{tpu_custom_call.1} parent=1 // pred_check_branch
      %33 = sbr.rel (0) target = $region13
    $region12: #{tpu_custom_call.1} parent=1 // pred_region
      %34 = dma.done [#allocation7], 256
    $region13: #{tpu_custom_call.1} parent=1 // pred_fallthru
      _
    // Predicated region
    $region14: #{tpu_custom_call.1} parent=1 // pred_check
      _
    $region15: #{tpu_custom_call.1} parent=1 // pred_check_branch
      %36 = sbr.rel (0) target = $region17
    $region16: #{tpu_custom_call.1} parent=1 // pred_region
      %37 = dma.done [#allocation9], 16
    $region17: #{tpu_custom_call.1} parent=1 // pred_fallthru
      _
    %38 = sfence
    %v39 = vld [vmem:[#allocation6] sm:$0xff]
    %v40 = vld [vmem:[#allocation6 + $0x8] sm:$0xff]
    %vm41 = vcmask 261120
    %v42 = vsel %vm41, %v39, inf
    %v43 = vrot.slane %v42, 4
    %v44 = vmin.f32 %v42, %v43
    %v45 = vrot.slane %v44, 2
    %v46 = vmin.f32 %v44, %v45
    %v47 = vrot.slane %v46, 1
    %v48 = vmin.f32 %v46, %v47
    %v49 = vsel %vm41, %v40, inf
    %v50 = vrot.slane %v49, 4
    %v51 = vmin.f32 %v49, %v50
    %v52 = vrot.slane %v51, 2
    %v53 = vmin.f32 %v51, %v52
    %v54 = vrot.slane %v53, 1
    %v55 = vmin.f32 %v53, %v54
    %v56 = vsel %vm41, %v39, -inf
    %v57 = vrot.slane %v56, 4
    %v58 = vmax.f32 %v56, %v57
    %v59 = vrot.slane %v58, 2
    %v60 = vmax.f32 %v58, %v59
    %v61 = vrot.slane %v60, 1
    %v62 = vmax.f32 %v60, %v61
    %v63 = vsel %vm41, %v40, -inf
    %v64 = vrot.slane %v63, 4
    %v65 = vmax.f32 %v63, %v64
    %v66 = vrot.slane %v65, 2
    %v67 = vmax.f32 %v65, %v66
    %v68 = vrot.slane %v67, 1
    %v69 = vmax.f32 %v67, %v68
    %v70 = vsel %vm41, %v39, 0.0
    %v71 = vrot.slane %v70, 4
    %v72 = vadd.f32 %v70, %v71
    %v73 = vrot.slane %v72, 2
    %v74 = vadd.f32 %v72, %v73
    %v75 = vrot.slane %v74, 1
    %v76 = vadd.f32 %v74, %v75
    %v77 = vsel %vm41, %v40, 0.0
    %v78 = vrot.slane %v77, 4
    %v79 = vadd.f32 %v77, %v78
    %v80 = vrot.slane %v79, 2
    %v81 = vadd.f32 %v79, %v80
    %v82 = vrot.slane %v81, 1
    %v83 = vadd.f32 %v81, %v82
    %p84 = scmp.eq.s32.totalorder 0, 0
    // Predicated region
    $region18: #{tpu_custom_call.1} parent=1 // pred_check
      %p85 = pneg %p84
    $region19: #{tpu_custom_call.1} parent=1 // pred_check_branch
      %87 = sbr.rel (%p85) target = $region21
    $region20: #{tpu_custom_call.1} parent=1 // pred_region
      %v90 = vrot.slane %v40, 7
      %vm91 = vcmask 1041409
      %v92 = vsel %vm91, %v90, %v39
      %vm94 = vcmask 254976
      %95 = vst.msk [vmem:[#allocation2] sm:$0x3] %vm94, %v92
      %v98 = vsel %vm91, %v55, %v48
      %100 = vst.msk [vmem:[#allocation3] sm:$0x3] %vm94, %v98
      %v103 = vsel %vm91, %v69, %v62
      %105 = vst.msk [vmem:[#allocation4] sm:$0x3] %vm94, %v103
      %v108 = vsel %vm91, %v83, %v76
      %110 = vst.msk [vmem:[#allocation5] sm:$0x3] %vm94, %v108
    $region21: #{tpu_custom_call.1} parent=1 // pred_fallthru
      _
    %p111 = scmp.ne.s32.totalorder 0, 0
    // Predicated region
    $region22: #{tpu_custom_call.1} parent=1 // pred_check
      %p112 = pneg %p111
    $region23: #{tpu_custom_call.1} parent=1 // pred_check_branch
      %114 = sbr.rel (%p112) target = $region25
    $region24: #{tpu_custom_call.1} parent=1 // pred_region
      %v115 = vld [vmem:[#allocation3] sm:$0x3]
      %vm118 = vcmask 1041409
      %v119 = vsel %vm118, %v55, %v48
      %v121 = vmin.f32 %v115, %v119
      %vm122 = vcmask 254976
      %123 = vst.msk [vmem:[#allocation3] sm:$0x3] %vm122, %v121
      %v124 = vld [vmem:[#allocation4] sm:$0x3]
      %v127 = vsel %vm118, %v69, %v62
      %v129 = vmax.f32 %v124, %v127
      %130 = vst.msk [vmem:[#allocation4] sm:$0x3] %vm122, %v129
      %v131 = vld [vmem:[#allocation5] sm:$0x3]
      %v134 = vsel %vm118, %v83, %v76
      %v136 = vadd.f32 %v131, %v134
      %137 = vst.msk [vmem:[#allocation5] sm:$0x3] %vm122, %v136
    $region25: #{tpu_custom_call.1} parent=1 // pred_fallthru
      _
    // Predicated region
    $region26: #{tpu_custom_call.1} parent=1 // pred_check
      %p138 = pneg %p84
    $region27: #{tpu_custom_call.1} parent=1 // pred_check_branch
      %140 = sbr.rel (%p138) target = $region29
    $region28: #{tpu_custom_call.1} parent=1 // pred_region
      %v141 = vld [vmem:[#allocation2] sm:$0x3]
      %v142 = vld [vmem:[#allocation3] sm:$0x3]
      %v143 = vld [vmem:[#allocation4] sm:$0x3]
      %v144 = vld [vmem:[#allocation5] sm:$0x3]
      %v145 = vmul.f32 %v144, 0.125
      %s146 = sld [smem:[#allocation10 + $0x2]]
      %v147 = vstv %s146
      %v148 = vmul.f32 %v147, %v141
      %s149 = sld [smem:[#allocation10 + $0x7]]
      %v150 = vstv %s149
      %v151 = vmul.f32 %v150, %v142
      %v152 = vadd.f32 %v148, %v151
      %s153 = sld [smem:[#allocation10 + $0xc]]
      %v154 = vstv %s153
      %v155 = vmul.f32 %v154, %v143
      %v156 = vadd.f32 %v152, %v155
      %s157 = sld [smem:[#allocation10 + $0x11]]
      %v158 = vstv %s157
      %v159 = vmul.f32 %v158, %v145
      %v160 = vadd.f32 %v156, %v159
      %s161 = sld [smem:[#allocation10]]
      %v162 = vstv %s161
      %v163 = vmul.f32 %v162, %v141
      %s164 = sld [smem:[#allocation10 + $0x5]]
      %v165 = vstv %s164
      %v166 = vmul.f32 %v165, %v142
      %v167 = vadd.f32 %v163, %v166
      %s168 = sld [smem:[#allocation10 + $0xa]]
      %v169 = vstv %s168
      %v170 = vmul.f32 %v169, %v143
      %v171 = vadd.f32 %v167, %v170
      %s172 = sld [smem:[#allocation10 + $0xf]]
      %v173 = vstv %s172
      %v174 = vmul.f32 %v173, %v145
      %v175 = vadd.f32 %v171, %v174
      %177 = vrot.lane.b32.xlu0 %v175, 2
      %v178 = vpop.permute.xlu0 %177
      %vm180 = vcmask 15360
      %v181 = vsel %vm180, 0.0, %v178
      %v182 = vadd.f32 %v160, %v181
      %s183 = sld [smem:[#allocation10 + $0x1]]
      %v184 = vstv %s183
      %v185 = vmul.f32 %v184, %v141
      %s186 = sld [smem:[#allocation10 + $0x6]]
      %v187 = vstv %s186
      %v188 = vmul.f32 %v187, %v142
      %v189 = vadd.f32 %v185, %v188
      %s190 = sld [smem:[#allocation10 + $0xb]]
      %v191 = vstv %s190
      %v192 = vmul.f32 %v191, %v143
      %v193 = vadd.f32 %v189, %v192
      %s194 = sld [smem:[#allocation10 + $0x10]]
      %v195 = vstv %s194
      %v196 = vmul.f32 %v195, %v145
      %v197 = vadd.f32 %v193, %v196
      %199 = vrot.lane.b32.xlu0 %v197, 1
      %v200 = vpop.permute.xlu0 %199
      %vm202 = vcmask 7168
      %v203 = vsel %vm202, 0.0, %v200
      %v204 = vadd.f32 %v182, %v203
      %s205 = sld [smem:[#allocation10 + $0x3]]
      %v206 = vstv %s205
      %v207 = vmul.f32 %v206, %v141
      %s208 = sld [smem:[#allocation10 + $0x8]]
      %v209 = vstv %s208
      %v210 = vmul.f32 %v209, %v142
      %v211 = vadd.f32 %v207, %v210
      %s212 = sld [smem:[#allocation10 + $0xd]]
      %v213 = vstv %s212
      %v214 = vmul.f32 %v213, %v143
      %v215 = vadd.f32 %v211, %v214
      %s216 = sld [smem:[#allocation10 + $0x12]]
      %v217 = vstv %s216
      %v218 = vmul.f32 %v217, %v145
      %v219 = vadd.f32 %v215, %v218
      %221 = vrot.lane.b32.xlu0 %v219, 127
      %v222 = vpop.permute.xlu0 %221
      %vm224 = vcmask 252928
      %v225 = vsel %vm224, %v222, 0.0
      %v226 = vadd.f32 %v204, %v225
      %s227 = sld [smem:[#allocation10 + $0x4]]
      %v228 = vstv %s227
      %v229 = vmul.f32 %v228, %v141
      %s230 = sld [smem:[#allocation10 + $0x9]]
      %v231 = vstv %s230
      %v232 = vmul.f32 %v231, %v142
      %v233 = vadd.f32 %v229, %v232
      %s234 = sld [smem:[#allocation10 + $0xe]]
      %v235 = vstv %s234
      %v236 = vmul.f32 %v235, %v143
      %v237 = vadd.f32 %v233, %v236
      %s238 = sld [smem:[#allocation10 + $0x13]]
      %v239 = vstv %s238
      %v240 = vmul.f32 %v239, %v145
      %v241 = vadd.f32 %v237, %v240
      %243 = vrot.lane.b32.xlu0 %v241, 126
      %v244 = vpop.permute.xlu0 %243
      %vm246 = vcmask 244736
      %v247 = vsel %vm246, %v244, 0.0
      %v248 = vadd.f32 %v226, %v247
      %vm249 = vcmask 254976
      %250 = vst.msk [vmem:[#allocation11] sm:$0x3] %vm249, %v248
    $region29: #{tpu_custom_call.1} parent=1 // pred_fallthru
      _
    // Predicated region
    $region30: #{tpu_custom_call.1} parent=1 // pred_check
      _
    $region31: #{tpu_custom_call.1} parent=1 // pred_check_branch
      %252 = sbr.rel (0) target = $region33
    $region32: #{tpu_custom_call.1} parent=1 // pred_region
      %s254 = ssub.s32 32, 32
      %255 = vsyncadd [#allocation8], %s254
      %s257 = sshll.u32 [#allocation11], 4
      %s258 = int_to_ptr.vmem [resolvable:$true] %s257
      %260 = dma.vmem_to_hbm [thread:$0]  %s258, 32, %s2, [#allocation8]
    $region33: #{tpu_custom_call.1} parent=1 // pred_fallthru
      _
    // Predicated region
    $region34: #{tpu_custom_call.1} parent=1 // pred_check
      _
    $region35: #{tpu_custom_call.1} parent=1 // pred_check_branch
      %262 = sbr.rel (0) target = $region37
    $region36: #{tpu_custom_call.1} parent=1 // pred_region
      %263 = dma.done [#allocation8], 32
    $region37: #{tpu_custom_call.1} parent=1 // pred_fallthru
      _
    %264 = vsyncpa [#allocation7], 1
    %265 = vsyncpa [#allocation8], 1
    %266 = vsyncpa [#allocation9], 1

</llo_original>
